<compile_context>
chip_gen: v7x
topology: tpu7x:2x2x1
jax: 0.10.0
libtpu: 0.0.40
codegen_flags: <defaults>
</compile_context>

<pallas_src>
import functools

import jax
import jax.numpy as jnp
from jax.experimental import pallas as pl
from jax.experimental.pallas import tpu as pltpu


LANES = 128          # rays per lane row
R_TILE_MAX = 512     # sublane rows per grid step (512 * 128 = 65536 rays/step)


def _round_up(x: int, m: int) -> int:
    return ((x + m - 1) // m) * m


def _choose_r_tile(r_rows: int) -> int:
    """Pick a sublane-row tile: big (512) for large inputs, otherwise sized so
    the grid still has >= 2 steps (megacore) while staying 8-aligned."""
    if r_rows >= 2 * R_TILE_MAX:
        return R_TILE_MAX
    half = _round_up(pl.cdiv(r_rows, 2), 8)
    return max(8, min(half, R_TILE_MAX))


def _ray_aabb_kernel(o_ref, d_ref, nf_ref, *, bound):
    """Per-ray AABB slab intersection.

    o_ref, d_ref : (3, r_tile, 128) f32 blocks (ray origins / directions)
    nf_ref       : (2, r_tile, 128) f32 block  ([0] = near, [1] = far)
    """
    o = o_ref[...]                       # (3, r_tile, 128)
    d = d_ref[...]                       # (3, r_tile, 128)

    aabb_min = jnp.float32(-bound)
    aabb_max = jnp.float32(bound)

    # NOTE: epsilon matches the pure-JAX reference (sign of tiny negative
    # components is flipped, as in the original implementation).
    inv_d = pl.reciprocal(d + jnp.float32(1e-15), approx=True)   # EUP, free slot
    t1 = (aabb_min - o) * inv_d
    t2 = (aabb_max - o) * inv_d

    tmin = jnp.minimum(t1, t2)           # (3, r_tile, 128)
    tmax = jnp.maximum(t1, t2)

    # component reduction across the leading (non-vreg) axis: pure VPU max/min
    near = jnp.maximum(jnp.maximum(tmin[0], tmin[1]), tmin[2])   # (r_tile, 128)
    far = jnp.minimum(jnp.minimum(tmax[0], tmax[1]), tmax[2])    # (r_tile, 128)
    far = jnp.maximum(far, near)         # keep far >= near

    # two lane-dense, unmasked stores into the fused (2, r_tile, 128) output
    nf_ref[0, :, :] = near
    nf_ref[1, :, :] = far


class BaseRendererPallas:
    """JAX/Pallas counterpart of NeMo BaseRenderer."""

    def __init__(self, bound: float, update_interval: int):
        self.bound = float(bound)
        self.update_interval = update_interval
        # registered buffer (exact PyTorch semantics / dtype)
        self.aabb = jnp.asarray(
            [-bound, -bound, -bound, bound, bound, bound], dtype=jnp.float32
        )

    def update_step(self, epoch: int, global_step: int, decay: float = 0.95, **kwargs):
        # TODO(synk): abstract in the PyTorch module (raises NotImplementedError).
        raise NotImplementedError

    def ray_aabb_intersect(self, rays_o, rays_d):
        """rays_o, rays_d: f32[3, N] (component-major) -> (nears, fars) f32[1, N]."""
        assert rays_o.shape == rays_d.shape and rays_o.shape[0] == 3
        n = rays_o.shape[1]

        # pad ray count up to a whole number of (r_tile, 128) tiles
        r_rows = pl.cdiv(n, LANES)
        r_tile = _choose_r_tile(r_rows)
        r_pad = _round_up(max(r_rows, r_tile), r_tile)
        n_pad = r_pad * LANES

        rays_o = rays_o.astype(jnp.float32)
        rays_d = rays_d.astype(jnp.float32)
        pad = n_pad - n
        if pad:
            rays_o = jnp.pad(rays_o, ((0, 0), (0, pad)))
            rays_d = jnp.pad(rays_d, ((0, 0), (0, pad)), constant_values=1.0)

        # (3, N_pad) -> (3, R, 128): lane/sublane-dense layout
        o3 = rays_o.reshape(3, r_pad, LANES)
        d3 = rays_d.reshape(3, r_pad, LANES)

        kernel = functools.partial(_ray_aabb_kernel, bound=self.bound)
        nf = pl.pallas_call(
            kernel,
            out_shape=jax.ShapeDtypeStruct((2, r_pad, LANES), jnp.float32),
            grid_spec=pltpu.PrefetchScalarGridSpec(
                num_scalar_prefetch=0,
                grid=(r_pad // r_tile,),
                in_specs=[
                    pl.BlockSpec((3, r_tile, LANES), lambda i: (0, i, 0)),
                    pl.BlockSpec((3, r_tile, LANES), lambda i: (0, i, 0)),
                ],
                out_specs=pl.BlockSpec((2, r_tile, LANES), lambda i: (0, i, 0)),
            ),
            compiler_params=pltpu.CompilerParams(
                dimension_semantics=("parallel",)
            ),
        )(o3, d3)

        nf = nf.reshape(2, n_pad)[:, :n]
        nears = nf[0:1, :]
        fars = nf[1:2, :]
        return nears, fars

    def forward(self, rays_o, rays_d, return_normal_image=False,
                return_normal_perturb=False, **kwargs):
        # TODO(synk): forward is abstract in PyTorch (raises NotImplementedError);
        # we expose the aabb-derived ray intersection as the kernelized compute.
        return self.ray_aabb_intersect(rays_o, rays_d)


if __name__ == "__main__":
    key = jax.random.PRNGKey(0)
    k_o, k_d = jax.random.split(key)

    # small demo: batch=2 images of 16x16 rays -> 512 rays, component-major [3, N]
    n_rays = 2 * 16 * 16
    rays_o = jax.random.uniform(k_o, (3, n_rays), jnp.float32, -0.5, 0.5)
    d = jax.random.normal(k_d, (3, n_rays), jnp.float32)
    rays_d = d / jnp.linalg.norm(d, axis=0, keepdims=True)

    renderer = BaseRendererPallas(bound=1.0, update_interval=16)
    nears, fars = renderer.forward(rays_o, rays_d)
    jax.block_until_ready((nears, fars))

    # sanity check against pure-JAX reference (tolerance accounts for the
    # EUP approximate reciprocal used in-kernel)
    inv_d = 1.0 / (rays_d + 1e-15)
    t1 = (-1.0 - rays_o) * inv_d
    t2 = (1.0 - rays_o) * inv_d
    ref_near = jnp.max(jnp.minimum(t1, t2), axis=0, keepdims=True)
    ref_far = jnp.maximum(jnp.min(jnp.maximum(t1, t2), axis=0, keepdims=True), ref_near)
    assert nears.shape == (1, n_rays) and fars.shape == (1, n_rays)
    assert jnp.allclose(nears, ref_near, rtol=1e-2, atol=1e-2)
    assert jnp.allclose(fars, ref_far, rtol=1e-2, atol=1e-2)

    print("KERNEL_OK")
</pallas_src>

<mosaic_0001>
module attributes {stable_mosaic.version = 11 : i64} {
  func.func @_ray_aabb_kernel(%arg0: i32, %arg1: memref<3x8x128xf32, #tpu.memory_space<vmem>>, %arg2: memref<3x8x128xf32, #tpu.memory_space<vmem>>, %arg3: memref<2x8x128xf32, #tpu.memory_space<vmem>>) attributes {dimension_semantics = [#tpu.dimension_semantics<parallel>], iteration_bounds = array<i64: 1>, scalar_prefetch = 0 : i64, scratch_operands = 0 : i64, tpu.core_type = #tpu.core_type<tc>, window_params = [{transform_indices = @transform_0, window_bounds = array<i64: 3, 8, 128>}, {transform_indices = @transform_1, window_bounds = array<i64: 3, 8, 128>}, {transform_indices = @transform_2, window_bounds = array<i64: 2, 8, 128>}]} {
    %c0 = arith.constant 0 : index
    %c0_0 = arith.constant 0 : index
    %c0_1 = arith.constant 0 : index
    %0 = vector.load %arg1[%c0, %c0_0, %c0_1] : memref<3x8x128xf32, #tpu.memory_space<vmem>>, vector<3x8x128xf32>
    %c0_2 = arith.constant 0 : index
    %c0_3 = arith.constant 0 : index
    %c0_4 = arith.constant 0 : index
    %1 = vector.load %arg2[%c0_2, %c0_3, %c0_4] : memref<3x8x128xf32, #tpu.memory_space<vmem>>, vector<3x8x128xf32>
    %cst = arith.constant 1.000000e-15 : f32
    %2 = vector.broadcast %cst : f32 to vector<3x8x128xf32>
    %3 = arith.addf %1, %2 : vector<3x8x128xf32>
    %4 = tpu.reciprocal %3 {approx = true} : vector<3x8x128xf32> -> vector<3x8x128xf32>
    %cst_5 = arith.constant -1.000000e+00 : f32
    %5 = vector.broadcast %cst_5 : f32 to vector<3x8x128xf32>
    %6 = arith.subf %5, %0 : vector<3x8x128xf32>
    %7 = arith.mulf %6, %4 : vector<3x8x128xf32>
    %cst_6 = arith.constant 1.000000e+00 : f32
    %8 = vector.broadcast %cst_6 : f32 to vector<3x8x128xf32>
    %9 = arith.subf %8, %0 : vector<3x8x128xf32>
    %10 = arith.mulf %9, %4 : vector<3x8x128xf32>
    %11 = arith.minimumf %7, %10 : vector<3x8x128xf32>
    %12 = arith.maximumf %7, %10 : vector<3x8x128xf32>
    %13 = vector.extract_strided_slice %11 {offsets = [0, 0, 0], sizes = [1, 8, 128], strides = [1, 1, 1]} : vector<3x8x128xf32> to vector<1x8x128xf32>
    %14 = vector.shape_cast %13 : vector<1x8x128xf32> to vector<8x128xf32>
    %15 = vector.extract_strided_slice %11 {offsets = [1, 0, 0], sizes = [1, 8, 128], strides = [1, 1, 1]} : vector<3x8x128xf32> to vector<1x8x128xf32>
    %16 = vector.shape_cast %15 : vector<1x8x128xf32> to vector<8x128xf32>
    %17 = arith.maximumf %14, %16 : vector<8x128xf32>
    %18 = vector.extract_strided_slice %11 {offsets = [2, 0, 0], sizes = [1, 8, 128], strides = [1, 1, 1]} : vector<3x8x128xf32> to vector<1x8x128xf32>
    %19 = vector.shape_cast %18 : vector<1x8x128xf32> to vector<8x128xf32>
    %20 = arith.maximumf %17, %19 : vector<8x128xf32>
    %21 = vector.extract_strided_slice %12 {offsets = [0, 0, 0], sizes = [1, 8, 128], strides = [1, 1, 1]} : vector<3x8x128xf32> to vector<1x8x128xf32>
    %22 = vector.shape_cast %21 : vector<1x8x128xf32> to vector<8x128xf32>
    %23 = vector.extract_strided_slice %12 {offsets = [1, 0, 0], sizes = [1, 8, 128], strides = [1, 1, 1]} : vector<3x8x128xf32> to vector<1x8x128xf32>
    %24 = vector.shape_cast %23 : vector<1x8x128xf32> to vector<8x128xf32>
    %25 = arith.minimumf %22, %24 : vector<8x128xf32>
    %26 = vector.extract_strided_slice %12 {offsets = [2, 0, 0], sizes = [1, 8, 128], strides = [1, 1, 1]} : vector<3x8x128xf32> to vector<1x8x128xf32>
    %27 = vector.shape_cast %26 : vector<1x8x128xf32> to vector<8x128xf32>
    %28 = arith.minimumf %25, %27 : vector<8x128xf32>
    %29 = arith.maximumf %28, %20 : vector<8x128xf32>
    %c0_7 = arith.constant 0 : index
    %c0_8 = arith.constant 0 : index
    %c0_9 = arith.constant 0 : index
    %30 = vector.load %arg3[%c0_7, %c0_8, %c0_9] : memref<2x8x128xf32, #tpu.memory_space<vmem>>, vector<1x8x128xf32>
    %31 = vector.shape_cast %30 : vector<1x8x128xf32> to vector<8x128xf32>
    %32 = vector.shape_cast %20 : vector<8x128xf32> to vector<1x8x128xf32>
    tpu.vector_store %arg3[%c0_7, %c0_8, %c0_9], %32 {strides = array<i32>} : memref<2x8x128xf32, #tpu.memory_space<vmem>>, vector<1x8x128xf32>,
    %c1 = arith.constant 1 : index
    %c0_10 = arith.constant 0 : index
    %c0_11 = arith.constant 0 : index
    %33 = vector.load %arg3[%c1, %c0_10, %c0_11] : memref<2x8x128xf32, #tpu.memory_space<vmem>>, vector<1x8x128xf32>
    %34 = vector.shape_cast %33 : vector<1x8x128xf32> to vector<8x128xf32>
    %35 = vector.shape_cast %29 : vector<8x128xf32> to vector<1x8x128xf32>
    tpu.vector_store %arg3[%c1, %c0_10, %c0_11], %35 {strides = array<i32>} : memref<2x8x128xf32, #tpu.memory_space<vmem>>, vector<1x8x128xf32>,
    return
  }
  func.func @transform_0(%arg0: i32) -> (i32, i32, i32) {
    %c0_i32 = arith.constant 0 : i32
    %c0_i32_0 = arith.constant 0 : i32
    %c0_i32_1 = arith.constant 0 : i32
    return %c0_i32, %arg0, %c0_i32_0 : i32, i32, i32
  }
  func.func @transform_1(%arg0: i32) -> (i32, i32, i32) {
    %c0_i32 = arith.constant 0 : i32
    %c0_i32_0 = arith.constant 0 : i32
    %c0_i32_1 = arith.constant 0 : i32
    return %c0_i32, %arg0, %c0_i32_0 : i32, i32, i32
  }
  func.func @transform_2(%arg0: i32) -> (i32, i32, i32) {
    %c0_i32 = arith.constant 0 : i32
    %c0_i32_0 = arith.constant 0 : i32
    %c0_i32_1 = arith.constant 0 : i32
    return %c0_i32, %arg0, %c0_i32_0 : i32, i32, i32
  }
}

</mosaic_0001>

<llo_original>
// kernel: tpu_custom_call.1
$region0: #{tpu_custom_call.1}
  #allocation0 [shape = 'u32[]', space=smem, size = 0x4, offset = 0x4, fixed_abs, tag = 'smem constant byte address 0x4 - core index']
  #allocation1 [shape = 'u32[144,128]{1,0:T(1,128)}', space=vmem, size = 0x12000, scoped, tag = 'internal scratch']
  %s0 = inlined_call_operand.hbm [shape: f32[3,8,128], index: 0, kind: input, shape index: {}]
  %s1 = inlined_call_operand.hbm [shape: f32[3,8,128], index: 1, kind: input, shape index: {}]
  %s2 = inlined_call_operand.hbm [shape: f32[2,8,128], index: 2, kind: output, shape index: {}]
  %s3 = sld [smem:[#allocation0]]
  $region26: #{tpu_custom_call.1} parent=0
    _
  %s5 = ssub.s32 1, %s3
  %s6 = scalar_select 0, %s5, %s3
  $region1: #{tpu_custom_call.1} parent=0
    #allocation2 [shape = 'u8[12288]{0}', space=vmem, size = 0x3000, scoped, tag = 'input window, operand 0, single buffered']
    #allocation3 [shape = 's32[1]{0}', space=sflag, size = 0x4, scoped, tag = 'scoped memory for tpu_custom_call.1']
    #allocation4 [shape = 's32[1]{0}', space=sflag, size = 0x4, scoped, tag = 'scoped memory for tpu_custom_call.1']
    #allocation5 [shape = 'u8[12288]{0}', space=vmem, size = 0x3000, scoped, tag = 'input window, operand 1, single buffered']
    #allocation6 [shape = 's32[1]{0}', space=sflag, size = 0x4, scoped, tag = 'scoped memory for tpu_custom_call.1']
    #allocation7 [shape = 'u8[8192]{0}', space=vmem, size = 0x2000, scoped, tag = 'output window, operand 0, single buffered']
    %7 = vsyncpa [#allocation3], 0
    %8 = vsyncpa [#allocation6], 0
    %9 = vsyncpa [#allocation4], 0
    // Predicated region
    $region2: #{tpu_custom_call.1} parent=1 // pred_check
      _
    $region3: #{tpu_custom_call.1} parent=1 // pred_check_branch
      %11 = sbr.rel (0) target = $region5
    $region4: #{tpu_custom_call.1} parent=1 // pred_region
      %s13 = ssub.s32 384, 384
      %14 = vsyncadd [#allocation3], %s13
      %s15 = sshll.u32 [#allocation2], 4
      %s16 = int_to_ptr.vmem [resolvable:$true] %s15
      %21 = dma.hbm_to_vmem [thread:$0]  %s0, 384, %s16, [#allocation3], 128, 128, 8
    $region5: #{tpu_custom_call.1} parent=1 // pred_fallthru
      _
    // Predicated region
    $region6: #{tpu_custom_call.1} parent=1 // pred_check
      _
    $region7: #{tpu_custom_call.1} parent=1 // pred_check_branch
      %23 = sbr.rel (0) target = $region9
    $region8: #{tpu_custom_call.1} parent=1 // pred_region
      %s25 = ssub.s32 384, 384
      %26 = vsyncadd [#allocation6], %s25
      %s27 = sshll.u32 [#allocation5], 4
      %s28 = int_to_ptr.vmem [resolvable:$true] %s27
      %33 = dma.hbm_to_vmem [thread:$0]  %s1, 384, %s28, [#allocation6], 128, 128, 8
    $region9: #{tpu_custom_call.1} parent=1 // pred_fallthru
      _
    // Predicated region
    $region10: #{tpu_custom_call.1} parent=1 // pred_check
      _
    $region11: #{tpu_custom_call.1} parent=1 // pred_check_branch
      %35 = sbr.rel (0) target = $region13
    $region12: #{tpu_custom_call.1} parent=1 // pred_region
      %36 = dma.done [#allocation3], 384
    $region13: #{tpu_custom_call.1} parent=1 // pred_fallthru
      _
    // Predicated region
    $region14: #{tpu_custom_call.1} parent=1 // pred_check
      _
    $region15: #{tpu_custom_call.1} parent=1 // pred_check_branch
      %38 = sbr.rel (0) target = $region17
    $region16: #{tpu_custom_call.1} parent=1 // pred_region
      %39 = dma.done [#allocation6], 384
    $region17: #{tpu_custom_call.1} parent=1 // pred_fallthru
      _
    %v40 = vld [vmem:[#allocation2] sm:$0xff]
    %v41 = vld [vmem:[#allocation2 + $0x8] sm:$0xff]
    %v42 = vld [vmem:[#allocation2 + $0x10] sm:$0xff]
    %v43 = vld [vmem:[#allocation5] sm:$0xff]
    %v44 = vld [vmem:[#allocation5 + $0x8] sm:$0xff]
    %v45 = vld [vmem:[#allocation5 + $0x10] sm:$0xff]
    %v46 = vadd.f32 %v43, 1e-15
    %v47 = vadd.f32 %v44, 1e-15
    %v48 = vadd.f32 %v45, 1e-15
    %v49 = vrcp.pop %v46
    %v50 = vrcp.pop %v47
    %v51 = vrcp.pop %v48
    %v52 = vsub.f32 -1.0, %v40
    %v53 = vsub.f32 -1.0, %v41
    %v54 = vsub.f32 -1.0, %v42
    %v55 = vmul.f32 %v52, %v49
    %v56 = vmul.f32 %v53, %v50
    %v57 = vmul.f32 %v54, %v51
    %v58 = vsub.f32 1.0, %v40
    %v59 = vsub.f32 1.0, %v41
    %v60 = vsub.f32 1.0, %v42
    %v61 = vmul.f32 %v58, %v49
    %v62 = vmul.f32 %v59, %v50
    %v63 = vmul.f32 %v60, %v51
    %v64 = vmin.f32 %v55, %v61
    %v65 = vmin.f32 %v56, %v62
    %v66 = vmin.f32 %v57, %v63
    %v67 = vmax.f32 %v55, %v61
    %v68 = vmax.f32 %v56, %v62
    %v69 = vmax.f32 %v57, %v63
    %v70 = vmax.f32 %v64, %v65
    %v71 = vmax.f32 %v70, %v66
    %v72 = vmin.f32 %v67, %v68
    %v73 = vmin.f32 %v72, %v69
    %v74 = vmax.f32 %v73, %v71
    %75 = vst [vmem:[#allocation7] sm:$0xff] %v71
    %s76 = scalar_lea.vmem [#allocation7], 8
    %77 = vst [vmem:[%s76] sm:$0xff] %v74
    // Predicated region
    $region18: #{tpu_custom_call.1} parent=1 // pred_check
      _
    $region19: #{tpu_custom_call.1} parent=1 // pred_check_branch
      %79 = sbr.rel (0) target = $region21
    $region20: #{tpu_custom_call.1} parent=1 // pred_region
      %s81 = ssub.s32 256, 256
      %82 = vsyncadd [#allocation4], %s81
      %s83 = sshll.u32 [#allocation7], 4
      %s84 = int_to_ptr.vmem [resolvable:$true] %s83
      %89 = dma.vmem_to_hbm [thread:$0]  %s84, 256, %s2, [#allocation4], 128, 128, 8
    $region21: #{tpu_custom_call.1} parent=1 // pred_fallthru
      _
    // Predicated region
    $region22: #{tpu_custom_call.1} parent=1 // pred_check
      _
    $region23: #{tpu_custom_call.1} parent=1 // pred_check_branch
      %91 = sbr.rel (0) target = $region25
    $region24: #{tpu_custom_call.1} parent=1 // pred_region
      %92 = dma.done [#allocation4], 256
    $region25: #{tpu_custom_call.1} parent=1 // pred_fallthru
      _
    %93 = vsyncpa [#allocation3], 1
    %94 = vsyncpa [#allocation6], 1
    %95 = vsyncpa [#allocation4], 1

</llo_original>
